<compile_context>
chip_gen: v6e
topology: v6e:2x2x1
jax: 0.10.0
libtpu: 0.0.40
codegen_flags: <defaults>
</compile_context>

<pallas_src>
import math

import jax
import jax.numpy as jnp
from jax import lax
from jax.experimental import pallas as pl
from jax.experimental.pallas import tpu as pltpu

EMBEDDING_DIM = 16   # small synthetic embedding dim
EMOTIONS_NUM = 8     # number of output classes
LANE = 128           # TPU lane width


def _round_up(x, m):
    return (x + m - 1) // m * m


def mlp_kernel(texts_ref, table_ref, b1_ref, w2_ref, b2_ref, out_ref):
    """Fused embedding-gather+fc1 (one matmul) + ReLU + (eval dropout) + fc2.

    texts_ref: (TB, L)      int32 token ids (per batch tile)
    table_ref: (L*Vp, Hp)   f32 fused gather/fc1 table (VMEM resident)
    b1_ref:    (1, Hp)      f32
    w2_ref:    (Hp, C)      f32
    b2_ref:    (1, C)       f32
    out_ref:   (TB, C)      f32 logits (true class count, no lane padding)
    """
    ids = texts_ref[...]                                   # (TB, L) int32
    tb, L = ids.shape
    LVp = table_ref.shape[0]
    Vp = LVp // L

    # One big one-hot over the fused (position, vocab) axis.  Column iota is
    # hoisted; per position we only need one compare + one add on the VPU.
    col = lax.broadcasted_iota(jnp.int32, (tb, LVp), 1)    # (TB, L*Vp)
    oh = jnp.zeros((tb, LVp), jnp.float32)
    for l in range(L):                                     # L is small & static
        tgt = ids[:, l:l + 1] + l * Vp                     # (TB, 1)
        oh = oh + (col == tgt).astype(jnp.float32)

    # gather + fc1 as a single MXU matmul, then bias + ReLU.
    h = jnp.dot(oh, table_ref[...], preferred_element_type=jnp.float32)
    h = jnp.maximum(h + b1_ref[...], 0.0)

    # dropout: identity in inference mode.
    # TODO(synk): train-mode dropout (pltpu.prng_random_bits mask) not implemented.

    out = jnp.dot(h, w2_ref[...], preferred_element_type=jnp.float32) + b2_ref[...]
    out_ref[...] = out.astype(out_ref.dtype)


def mlp_forward(texts, emb_table, w1_t, b1, w2_t, b2, *, batch_tile=None):
    """texts: (B, L) int32 token ids.  Returns (B, EMOTIONS_NUM) f32 logits.

    w1_t / w2_t are the nn.Linear weights pre-transposed to (in, out).
    Weight padding / emb@W1 folding below is parameter prep; with constant
    weights under jit XLA folds it (with traced weights it re-runs per call,
    but is tiny at these shapes).
    """
    B, L = texts.shape
    V, D = emb_table.shape
    in_dim = L * D
    H = w1_t.shape[1]
    C = w2_t.shape[1]
    assert w1_t.shape == (in_dim, H) and w2_t.shape == (H, C)

    Hp = _round_up(H, LANE)
    # Vp: smallest multiple of 8 with L*Vp % 128 == 0, so the fused table's
    # contraction dim is lane-dense / MXU friendly.
    vp_quant = max(8, LANE // math.gcd(L, LANE))
    Vp = _round_up(V, vp_quant)
    LVp = L * Vp

    f32 = jnp.float32
    hi = jax.lax.Precision.HIGHEST

    # Zero-pad (exact: ReLU(0)=0, zero W2 rows contribute 0, ids < V never
    # select padded vocab rows).
    emb_p = jnp.zeros((Vp, D), f32).at[:V, :].set(emb_table.astype(f32))
    w1_p = jnp.zeros((in_dim, Hp), f32).at[:, :H].set(w1_t.astype(f32))
    w1_p = w1_p.reshape(L, D, Hp)
    # Fold embedding into fc1: table[l*Vp + v, :] = emb[v] @ W1[l*D:(l+1)*D, :]
    table = jnp.einsum("vd,ldh->lvh", emb_p, w1_p, precision=hi).reshape(LVp, Hp)
    b1_p = jnp.zeros((1, Hp), f32).at[:, :H].set(b1.reshape(1, H).astype(f32))
    w2_p = jnp.zeros((Hp, C), f32).at[:H, :].set(w2_t.astype(f32))
    b2_p = b2.reshape(1, C).astype(f32)

    # Batch tiling: multiples of 256 fill the v6e/v7x MXU sublane height (also
    # fine on v5e); cap at 1024; aim for >= 2 grid steps so v7x's 2 TCs both
    # get work; never pad a tiny batch past one 8-row-aligned tile.
    if batch_tile is None:
        batch_tile = min(1024, _round_up(pl.cdiv(B, 2), 256))
        batch_tile = min(batch_tile, _round_up(B, 8))
    Bp = _round_up(B, batch_tile)
    texts_p = texts.astype(jnp.int32)
    if Bp != B:
        texts_p = jnp.zeros((Bp, L), jnp.int32).at[:B].set(texts_p)
    grid = (Bp // batch_tile,)

    grid_spec = pltpu.PrefetchScalarGridSpec(
        num_scalar_prefetch=0,
        grid=grid,
        in_specs=[
            pl.BlockSpec((batch_tile, L), lambda i: (i, 0)),   # token ids (tiled)
            pl.BlockSpec((LVp, Hp), lambda i: (0, 0)),         # fused emb@W1 table
            pl.BlockSpec((1, Hp), lambda i: (0, 0)),           # fc1 bias
            pl.BlockSpec((Hp, C), lambda i: (0, 0)),           # fc2 weight
            pl.BlockSpec((1, C), lambda i: (0, 0)),            # fc2 bias
        ],
        out_specs=pl.BlockSpec((batch_tile, C), lambda i: (i, 0)),  # true C lanes
    )

    out_p = pl.pallas_call(
        mlp_kernel,
        out_shape=jax.ShapeDtypeStruct((Bp, C), f32),
        grid_spec=grid_spec,
        compiler_params=pltpu.CompilerParams(
            dimension_semantics=("parallel",)),   # shards batch tiles on v7x's 2 TCs
    )(texts_p, table, b1_p, w2_p, b2_p)

    return out_p[:B] if Bp != B else out_p


if __name__ == "__main__":
    # Small synthetic config consistent with the module's forward.
    batch = 8
    sentence_len = 8
    hidden_size = 32
    vocab_size = 50

    key = jax.random.PRNGKey(0)
    k_emb, k_w1, k_b1, k_w2, k_b2, k_txt = jax.random.split(key, 6)

    emb_table = jax.random.normal(k_emb, (vocab_size, EMBEDDING_DIM),
                                  dtype=jnp.float32)
    in_features = sentence_len * EMBEDDING_DIM
    # PyTorch Linear stores W as (out, in); pass transposed (in, out) here.
    w1_t = 0.05 * jax.random.normal(k_w1, (in_features, hidden_size), jnp.float32)
    b1 = 0.05 * jax.random.normal(k_b1, (hidden_size,), jnp.float32)
    w2_t = 0.05 * jax.random.normal(k_w2, (hidden_size, EMOTIONS_NUM), jnp.float32)
    b2 = 0.05 * jax.random.normal(k_b2, (EMOTIONS_NUM,), jnp.float32)

    texts = jax.random.randint(k_txt, (batch, sentence_len), 0, vocab_size,
                               dtype=jnp.int32)

    logits = mlp_forward(texts, emb_table, w1_t, b1, w2_t, b2)
    logits = jax.block_until_ready(logits)

    # Reference: plain JAX, same math as the PyTorch forward (eval mode),
    # computed at HIGHEST precision so the comparison is apples-to-apples.
    hi = jax.lax.Precision.HIGHEST
    x_ref = jnp.take(emb_table, texts, axis=0).reshape(batch, -1)
    h_ref = jnp.maximum(jnp.dot(x_ref, w1_t, precision=hi) + b1, 0.0)
    ref = jnp.dot(h_ref, w2_t, precision=hi) + b2

    assert logits.shape == (batch, EMOTIONS_NUM)
    assert jnp.allclose(logits, ref, atol=1e-4, rtol=1e-4)

    print("KERNEL_OK")
</pallas_src>

<mosaic_0001>
module attributes {stable_mosaic.version = 11 : i64} {
  func.func @mlp_kernel(%arg0: i32, %arg1: memref<8x8xi32, #tpu.memory_space<vmem>>, %arg2: memref<512x128xf32, #tpu.memory_space<vmem>>, %arg3: memref<1x128xf32, #tpu.memory_space<vmem>>, %arg4: memref<128x8xf32, #tpu.memory_space<vmem>>, %arg5: memref<1x8xf32, #tpu.memory_space<vmem>>, %arg6: memref<8x8xf32, #tpu.memory_space<vmem>>) attributes {dimension_semantics = [#tpu.dimension_semantics<parallel>], iteration_bounds = array<i64: 1>, scalar_prefetch = 0 : i64, scratch_operands = 0 : i64, tpu.core_type = #tpu.core_type<tc>, window_params = [{transform_indices = @transform_0, window_bounds = array<i64: 8, 8>}, {pipeline_mode = #tpu.pipeline_mode<synchronous>, transform_indices = @transform_1, window_bounds = array<i64: 512, 128>}, {pipeline_mode = #tpu.pipeline_mode<synchronous>, transform_indices = @transform_2, window_bounds = array<i64: 1, 128>}, {pipeline_mode = #tpu.pipeline_mode<synchronous>, transform_indices = @transform_3, window_bounds = array<i64: 128, 8>}, {pipeline_mode = #tpu.pipeline_mode<synchronous>, transform_indices = @transform_4, window_bounds = array<i64: 1, 8>}, {transform_indices = @transform_5, window_bounds = array<i64: 8, 8>}]} {
    %c0 = arith.constant 0 : index
    %c0_0 = arith.constant 0 : index
    %0 = vector.load %arg1[%c0, %c0_0] : memref<8x8xi32, #tpu.memory_space<vmem>>, vector<8x8xi32>
    %1 = tpu.iota {dimensions = array<i32: 1>} : vector<8x512xi32>
    %cst = arith.constant 0.000000e+00 : f32
    %2 = vector.broadcast %cst : f32 to vector<8x512xf32>
    %3 = vector.extract_strided_slice %0 {offsets = [0, 0], sizes = [8, 1], strides = [1, 1]} : vector<8x8xi32> to vector<8x1xi32>
    %c0_i32 = arith.constant 0 : i32
    %4 = vector.broadcast %c0_i32 : i32 to vector<8x1xi32>
    %5 = arith.addi %3, %4 : vector<8x1xi32>
    %6 = vector.broadcast %5 : vector<8x1xi32> to vector<8x512xi32>
    %7 = arith.cmpi eq, %1, %6 : vector<8x512xi32>
    %8 = arith.extui %7 : vector<8x512xi1> to vector<8x512xi32>
    %9 = arith.sitofp %8 : vector<8x512xi32> to vector<8x512xf32>
    %10 = arith.addf %2, %9 : vector<8x512xf32>
    %11 = vector.extract_strided_slice %0 {offsets = [0, 1], sizes = [8, 1], strides = [1, 1]} : vector<8x8xi32> to vector<8x1xi32>
    %c64_i32 = arith.constant 64 : i32
    %12 = vector.broadcast %c64_i32 : i32 to vector<8x1xi32>
    %13 = arith.addi %11, %12 : vector<8x1xi32>
    %14 = vector.broadcast %13 : vector<8x1xi32> to vector<8x512xi32>
    %15 = arith.cmpi eq, %1, %14 : vector<8x512xi32>
    %16 = arith.extui %15 : vector<8x512xi1> to vector<8x512xi32>
    %17 = arith.sitofp %16 : vector<8x512xi32> to vector<8x512xf32>
    %18 = arith.addf %10, %17 : vector<8x512xf32>
    %19 = vector.extract_strided_slice %0 {offsets = [0, 2], sizes = [8, 1], strides = [1, 1]} : vector<8x8xi32> to vector<8x1xi32>
    %c128_i32 = arith.constant 128 : i32
    %20 = vector.broadcast %c128_i32 : i32 to vector<8x1xi32>
    %21 = arith.addi %19, %20 : vector<8x1xi32>
    %22 = vector.broadcast %21 : vector<8x1xi32> to vector<8x512xi32>
    %23 = arith.cmpi eq, %1, %22 : vector<8x512xi32>
    %24 = arith.extui %23 : vector<8x512xi1> to vector<8x512xi32>
    %25 = arith.sitofp %24 : vector<8x512xi32> to vector<8x512xf32>
    %26 = arith.addf %18, %25 : vector<8x512xf32>
    %27 = vector.extract_strided_slice %0 {offsets = [0, 3], sizes = [8, 1], strides = [1, 1]} : vector<8x8xi32> to vector<8x1xi32>
    %c192_i32 = arith.constant 192 : i32
    %28 = vector.broadcast %c192_i32 : i32 to vector<8x1xi32>
    %29 = arith.addi %27, %28 : vector<8x1xi32>
    %30 = vector.broadcast %29 : vector<8x1xi32> to vector<8x512xi32>
    %31 = arith.cmpi eq, %1, %30 : vector<8x512xi32>
    %32 = arith.extui %31 : vector<8x512xi1> to vector<8x512xi32>
    %33 = arith.sitofp %32 : vector<8x512xi32> to vector<8x512xf32>
    %34 = arith.addf %26, %33 : vector<8x512xf32>
    %35 = vector.extract_strided_slice %0 {offsets = [0, 4], sizes = [8, 1], strides = [1, 1]} : vector<8x8xi32> to vector<8x1xi32>
    %c256_i32 = arith.constant 256 : i32
    %36 = vector.broadcast %c256_i32 : i32 to vector<8x1xi32>
    %37 = arith.addi %35, %36 : vector<8x1xi32>
    %38 = vector.broadcast %37 : vector<8x1xi32> to vector<8x512xi32>
    %39 = arith.cmpi eq, %1, %38 : vector<8x512xi32>
    %40 = arith.extui %39 : vector<8x512xi1> to vector<8x512xi32>
    %41 = arith.sitofp %40 : vector<8x512xi32> to vector<8x512xf32>
    %42 = arith.addf %34, %41 : vector<8x512xf32>
    %43 = vector.extract_strided_slice %0 {offsets = [0, 5], sizes = [8, 1], strides = [1, 1]} : vector<8x8xi32> to vector<8x1xi32>
    %c320_i32 = arith.constant 320 : i32
    %44 = vector.broadcast %c320_i32 : i32 to vector<8x1xi32>
    %45 = arith.addi %43, %44 : vector<8x1xi32>
    %46 = vector.broadcast %45 : vector<8x1xi32> to vector<8x512xi32>
    %47 = arith.cmpi eq, %1, %46 : vector<8x512xi32>
    %48 = arith.extui %47 : vector<8x512xi1> to vector<8x512xi32>
    %49 = arith.sitofp %48 : vector<8x512xi32> to vector<8x512xf32>
    %50 = arith.addf %42, %49 : vector<8x512xf32>
    %51 = vector.extract_strided_slice %0 {offsets = [0, 6], sizes = [8, 1], strides = [1, 1]} : vector<8x8xi32> to vector<8x1xi32>
    %c384_i32 = arith.constant 384 : i32
    %52 = vector.broadcast %c384_i32 : i32 to vector<8x1xi32>
    %53 = arith.addi %51, %52 : vector<8x1xi32>
    %54 = vector.broadcast %53 : vector<8x1xi32> to vector<8x512xi32>
    %55 = arith.cmpi eq, %1, %54 : vector<8x512xi32>
    %56 = arith.extui %55 : vector<8x512xi1> to vector<8x512xi32>
    %57 = arith.sitofp %56 : vector<8x512xi32> to vector<8x512xf32>
    %58 = arith.addf %50, %57 : vector<8x512xf32>
    %59 = vector.extract_strided_slice %0 {offsets = [0, 7], sizes = [8, 1], strides = [1, 1]} : vector<8x8xi32> to vector<8x1xi32>
    %c448_i32 = arith.constant 448 : i32
    %60 = vector.broadcast %c448_i32 : i32 to vector<8x1xi32>
    %61 = arith.addi %59, %60 : vector<8x1xi32>
    %62 = vector.broadcast %61 : vector<8x1xi32> to vector<8x512xi32>
    %63 = arith.cmpi eq, %1, %62 : vector<8x512xi32>
    %64 = arith.extui %63 : vector<8x512xi1> to vector<8x512xi32>
    %65 = arith.sitofp %64 : vector<8x512xi32> to vector<8x512xf32>
    %66 = arith.addf %58, %65 : vector<8x512xf32>
    %c0_1 = arith.constant 0 : index
    %c0_2 = arith.constant 0 : index
    %67 = vector.load %arg2[%c0_1, %c0_2] : memref<512x128xf32, #tpu.memory_space<vmem>>, vector<512x128xf32>
    %cst_3 = arith.constant dense<0.000000e+00> : vector<8x128xf32>
    %68 = tpu.matmul %66, %67, %cst_3 {dimension_numbers = #tpu.dot_dimension_numbers<[1], [0], [0], [1], [0, 0, 1, 1], [], []>} : vector<8x512xf32>, vector<512x128xf32>, vector<8x128xf32> -> vector<8x128xf32>
    %c0_4 = arith.constant 0 : index
    %c0_5 = arith.constant 0 : index
    %69 = vector.load %arg3[%c0_4, %c0_5] : memref<1x128xf32, #tpu.memory_space<vmem>>, vector<1x128xf32>
    %70 = vector.broadcast %69 : vector<1x128xf32> to vector<8x128xf32>
    %71 = arith.addf %68, %70 : vector<8x128xf32>
    %cst_6 = arith.constant 0.000000e+00 : f32
    %72 = vector.broadcast %cst_6 : f32 to vector<8x128xf32>
    %73 = arith.maximumf %71, %72 : vector<8x128xf32>
    %c0_7 = arith.constant 0 : index
    %c0_8 = arith.constant 0 : index
    %74 = vector.load %arg4[%c0_7, %c0_8] : memref<128x8xf32, #tpu.memory_space<vmem>>, vector<128x8xf32>
    %cst_9 = arith.constant dense<0.000000e+00> : vector<8x8xf32>
    %75 = tpu.matmul %73, %74, %cst_9 {dimension_numbers = #tpu.dot_dimension_numbers<[1], [0], [0], [1], [0, 0, 1, 1], [], []>} : vector<8x128xf32>, vector<128x8xf32>, vector<8x8xf32> -> vector<8x8xf32>
    %c0_10 = arith.constant 0 : index
    %c0_11 = arith.constant 0 : index
    %76 = vector.load %arg5[%c0_10, %c0_11] : memref<1x8xf32, #tpu.memory_space<vmem>>, vector<1x8xf32>
    %77 = vector.broadcast %76 : vector<1x8xf32> to vector<8x8xf32>
    %78 = arith.addf %75, %77 : vector<8x8xf32>
    %c0_12 = arith.constant 0 : index
    %c0_13 = arith.constant 0 : index
    %79 = vector.load %arg6[%c0_12, %c0_13] : memref<8x8xf32, #tpu.memory_space<vmem>>, vector<8x8xf32>
    tpu.vector_store %arg6[%c0_12, %c0_13], %78 {strides = array<i32>} : memref<8x8xf32, #tpu.memory_space<vmem>>, vector<8x8xf32>,
    return
  }
  func.func @transform_0(%arg0: i32) -> (i32, i32) {
    %c0_i32 = arith.constant 0 : i32
    %c0_i32_0 = arith.constant 0 : i32
    return %arg0, %c0_i32 : i32, i32
  }
  func.func @transform_1(%arg0: i32) -> (i32, i32) {
    %c0_i32 = arith.constant 0 : i32
    %c0_i32_0 = arith.constant 0 : i32
    %c0_i32_1 = arith.constant 0 : i32
    return %c0_i32, %c0_i32_0 : i32, i32
  }
  func.func @transform_2(%arg0: i32) -> (i32, i32) {
    %c0_i32 = arith.constant 0 : i32
    %c0_i32_0 = arith.constant 0 : i32
    %c0_i32_1 = arith.constant 0 : i32
    return %c0_i32, %c0_i32_0 : i32, i32
  }
  func.func @transform_3(%arg0: i32) -> (i32, i32) {
    %c0_i32 = arith.constant 0 : i32
    %c0_i32_0 = arith.constant 0 : i32
    %c0_i32_1 = arith.constant 0 : i32
    return %c0_i32, %c0_i32_0 : i32, i32
  }
  func.func @transform_4(%arg0: i32) -> (i32, i32) {
    %c0_i32 = arith.constant 0 : i32
    %c0_i32_0 = arith.constant 0 : i32
    %c0_i32_1 = arith.constant 0 : i32
    return %c0_i32, %c0_i32_0 : i32, i32
  }
  func.func @transform_5(%arg0: i32) -> (i32, i32) {
    %c0_i32 = arith.constant 0 : i32
    %c0_i32_0 = arith.constant 0 : i32
    return %arg0, %c0_i32 : i32, i32
  }
}

</mosaic_0001>

<llo_original>
// kernel: tpu_custom_call.1
$region0: #{tpu_custom_call.1}
  #allocation0 [shape = 'u32[]', space=smem, size = 0x4, offset = 0x4, fixed_abs, tag = 'smem constant byte address 0x4 - core index']
  #allocation1 [shape = 'u32[144,128]{1,0:T(1,128)}', space=vmem, size = 0x12000, scoped, tag = 'internal scratch']
  %s0 = inlined_call_operand.vmem [shape: s32[8,8], index: 0, kind: input, shape index: {}]
  %s1 = inlined_call_operand.hbm [shape: f32[512,128], index: 1, kind: input, shape index: {}]
  %s2 = inlined_call_operand.vmem [shape: f32[1,128], index: 2, kind: input, shape index: {}]
  %s3 = inlined_call_operand.vmem [shape: f32[128,8], index: 3, kind: input, shape index: {}]
  %s4 = inlined_call_operand.vmem [shape: f32[1,8], index: 4, kind: input, shape index: {}]
  %s5 = inlined_call_operand.hbm [shape: f32[8,8], index: 5, kind: output, shape index: {}]
  %s6 = sld [smem:[#allocation0]]
  $region34: #{tpu_custom_call.1} parent=0
    _
  %s8 = ssub.s32 1, %s6
  %s9 = scalar_select 0, %s8, %s6
  $region1: #{tpu_custom_call.1} parent=0
    #allocation2 [shape = 'u8[262144]{0}', space=vmem, size = 0x40000, scoped, tag = 'input window, operand 1, single buffered']
    #allocation3 [shape = 's32[1]{0}', space=sflag, size = 0x4, scoped, tag = 'scoped memory for tpu_custom_call.1']
    #allocation4 [shape = 's32[1]{0}', space=sflag, size = 0x4, scoped, tag = 'scoped memory for tpu_custom_call.1']
    #allocation5 [shape = 'u8[4096]{0}', space=vmem, size = 0x1000, scoped, tag = 'output window, operand 0, single buffered']
    %10 = vsyncpa [#allocation3], 0
    %11 = vsyncpa [#allocation4], 0
    // Predicated region
    $region2: #{tpu_custom_call.1} parent=1 // pred_check
      _
    $region3: #{tpu_custom_call.1} parent=1 // pred_check_branch
      %13 = sbr.rel (0) target = $region5
    $region4: #{tpu_custom_call.1} parent=1 // pred_region
      _
    $region5: #{tpu_custom_call.1} parent=1 // pred_fallthru
      _
    // Predicated region
    $region6: #{tpu_custom_call.1} parent=1 // pred_check
      _
    $region7: #{tpu_custom_call.1} parent=1 // pred_check_branch
      %15 = sbr.rel (0) target = $region9
    $region8: #{tpu_custom_call.1} parent=1 // pred_region
      %s17 = ssub.s32 8192, 8192
      %18 = vsyncadd [#allocation3], %s17
      %s19 = sshll.u32 [#allocation2], 4
      %s20 = int_to_ptr.vmem [resolvable:$true] %s19
      %25 = dma.hbm_to_vmem [thread:$0]  %s1, 8192, %s20, [#allocation3], 128, 128, 8
    $region9: #{tpu_custom_call.1} parent=1 // pred_fallthru
      _
    // Predicated region
    $region10: #{tpu_custom_call.1} parent=1 // pred_check
      _
    $region11: #{tpu_custom_call.1} parent=1 // pred_check_branch
      %27 = sbr.rel (0) target = $region13
    $region12: #{tpu_custom_call.1} parent=1 // pred_region
      _
    $region13: #{tpu_custom_call.1} parent=1 // pred_fallthru
      _
    // Predicated region
    $region14: #{tpu_custom_call.1} parent=1 // pred_check
      _
    $region15: #{tpu_custom_call.1} parent=1 // pred_check_branch
      %29 = sbr.rel (0) target = $region17
    $region16: #{tpu_custom_call.1} parent=1 // pred_region
      _
    $region17: #{tpu_custom_call.1} parent=1 // pred_fallthru
      _
    // Predicated region
    $region18: #{tpu_custom_call.1} parent=1 // pred_check
      _
    $region19: #{tpu_custom_call.1} parent=1 // pred_check_branch
      %31 = sbr.rel (0) target = $region21
    $region20: #{tpu_custom_call.1} parent=1 // pred_region
      _
    $region21: #{tpu_custom_call.1} parent=1 // pred_fallthru
      _
    // Predicated region
    $region22: #{tpu_custom_call.1} parent=1 // pred_check
      _
    $region23: #{tpu_custom_call.1} parent=1 // pred_check_branch
      %33 = sbr.rel (0) target = $region25
    $region24: #{tpu_custom_call.1} parent=1 // pred_region
      %34 = dma.done [#allocation3], 8192
    $region25: #{tpu_custom_call.1} parent=1 // pred_fallthru
      _
    %v35 = vld [vmem:[%s0] sm:$0xff]
    %v36 = vlaneseq
    %v37 = vand.u32 %v36, 127
    %v38 = vadd.s32 %v37, 128
    %v39 = vadd.s32 %v37, 256
    %v40 = vadd.s32 %v37, 384
    %41 = vset.pattern.permute.xlu0 0
    %42 = vperm.xlu0 %41, %v35
    %v43 = vpop.permute.xlu0 %42
    %vm44 = vcmp.eq.s32.totalorder %v37, %v43
    %vm45 = vcmp.eq.s32.totalorder %v38, %v43
    %vm46 = vcmp.eq.s32.totalorder %v39, %v43
    %vm47 = vcmp.eq.s32.totalorder %v40, %v43
    %v48 = vsel %vm44, 1, 0
    %v49 = vsel %vm45, 1, 0
    %v50 = vsel %vm46, 1, 0
    %v51 = vsel %vm47, 1, 0
    %v52 = vcvt.s32.f32 %v48
    %v53 = vcvt.s32.f32 %v49
    %v54 = vcvt.s32.f32 %v50
    %v55 = vcvt.s32.f32 %v51
    %v56 = vadd.f32 %v52, 0.0
    %v57 = vadd.f32 %v53, 0.0
    %v58 = vadd.f32 %v54, 0.0
    %v59 = vadd.f32 %v55, 0.0
    %v60 = vadd.s32 %v35, 64
    %61 = vset.pattern.permute.xlu0 1
    %62 = vperm.xlu0 %61, %v60
    %v63 = vpop.permute.xlu0 %62
    %vm64 = vcmp.eq.s32.totalorder %v37, %v63
    %vm65 = vcmp.eq.s32.totalorder %v38, %v63
    %vm66 = vcmp.eq.s32.totalorder %v39, %v63
    %vm67 = vcmp.eq.s32.totalorder %v40, %v63
    %v68 = vsel %vm64, 1, 0
    %v69 = vsel %vm65, 1, 0
    %v70 = vsel %vm66, 1, 0
    %v71 = vsel %vm67, 1, 0
    %v72 = vcvt.s32.f32 %v68
    %v73 = vcvt.s32.f32 %v69
    %v74 = vcvt.s32.f32 %v70
    %v75 = vcvt.s32.f32 %v71
    %v76 = vadd.f32 %v56, %v72
    %v77 = vadd.f32 %v57, %v73
    %v78 = vadd.f32 %v58, %v74
    %v79 = vadd.f32 %v59, %v75
    %v80 = vadd.s32 %v35, 128
    %81 = vset.pattern.permute.xlu0 2
    %82 = vperm.xlu0 %81, %v80
    %v83 = vpop.permute.xlu0 %82
    %vm84 = vcmp.eq.s32.totalorder %v37, %v83
    %vm85 = vcmp.eq.s32.totalorder %v38, %v83
    %vm86 = vcmp.eq.s32.totalorder %v39, %v83
    %vm87 = vcmp.eq.s32.totalorder %v40, %v83
    %v88 = vsel %vm84, 1, 0
    %v89 = vsel %vm85, 1, 0
    %v90 = vsel %vm86, 1, 0
    %v91 = vsel %vm87, 1, 0
    %v92 = vcvt.s32.f32 %v88
    %v93 = vcvt.s32.f32 %v89
    %v94 = vcvt.s32.f32 %v90
    %v95 = vcvt.s32.f32 %v91
    %v96 = vadd.f32 %v76, %v92
    %v97 = vadd.f32 %v77, %v93
    %v98 = vadd.f32 %v78, %v94
    %v99 = vadd.f32 %v79, %v95
    %v100 = vadd.s32 %v35, 192
    %101 = vset.pattern.permute.xlu0 3
    %102 = vperm.xlu0 %101, %v100
    %v103 = vpop.permute.xlu0 %102
    %vm104 = vcmp.eq.s32.totalorder %v37, %v103
    %vm105 = vcmp.eq.s32.totalorder %v38, %v103
    %vm106 = vcmp.eq.s32.totalorder %v39, %v103
    %vm107 = vcmp.eq.s32.totalorder %v40, %v103
    %v108 = vsel %vm104, 1, 0
    %v109 = vsel %vm105, 1, 0
    %v110 = vsel %vm106, 1, 0
    %v111 = vsel %vm107, 1, 0
    %v112 = vcvt.s32.f32 %v108
    %v113 = vcvt.s32.f32 %v109
    %v114 = vcvt.s32.f32 %v110
    %v115 = vcvt.s32.f32 %v111
    %v116 = vadd.f32 %v96, %v112
    %v117 = vadd.f32 %v97, %v113
    %v118 = vadd.f32 %v98, %v114
    %v119 = vadd.f32 %v99, %v115
    %v120 = vadd.s32 %v35, 256
    %121 = vset.pattern.permute.xlu0 4
    %122 = vperm.xlu0 %121, %v120
    %v123 = vpop.permute.xlu0 %122
    %vm124 = vcmp.eq.s32.totalorder %v37, %v123
    %vm125 = vcmp.eq.s32.totalorder %v38, %v123
    %vm126 = vcmp.eq.s32.totalorder %v39, %v123
    %vm127 = vcmp.eq.s32.totalorder %v40, %v123
    %v128 = vsel %vm124, 1, 0
    %v129 = vsel %vm125, 1, 0
    %v130 = vsel %vm126, 1, 0
    %v131 = vsel %vm127, 1, 0
    %v132 = vcvt.s32.f32 %v128
    %v133 = vcvt.s32.f32 %v129
    %v134 = vcvt.s32.f32 %v130
    %v135 = vcvt.s32.f32 %v131
    %v136 = vadd.f32 %v116, %v132
    %v137 = vadd.f32 %v117, %v133
    %v138 = vadd.f32 %v118, %v134
    %v139 = vadd.f32 %v119, %v135
    %v140 = vadd.s32 %v35, 320
    %141 = vset.pattern.permute.xlu0 5
    %142 = vperm.xlu0 %141, %v140
    %v143 = vpop.permute.xlu0 %142
    %vm144 = vcmp.eq.s32.totalorder %v37, %v143
    %vm145 = vcmp.eq.s32.totalorder %v38, %v143
    %vm146 = vcmp.eq.s32.totalorder %v39, %v143
    %vm147 = vcmp.eq.s32.totalorder %v40, %v143
    %v148 = vsel %vm144, 1, 0
    %v149 = vsel %vm145, 1, 0
    %v150 = vsel %vm146, 1, 0
    %v151 = vsel %vm147, 1, 0
    %v152 = vcvt.s32.f32 %v148
    %v153 = vcvt.s32.f32 %v149
    %v154 = vcvt.s32.f32 %v150
    %v155 = vcvt.s32.f32 %v151
    %v156 = vadd.f32 %v136, %v152
    %v157 = vadd.f32 %v137, %v153
    %v158 = vadd.f32 %v138, %v154
    %v159 = vadd.f32 %v139, %v155
    %v160 = vadd.s32 %v35, 384
    %161 = vset.pattern.permute.xlu0 6
    %162 = vperm.xlu0 %161, %v160
    %v163 = vpop.permute.xlu0 %162
    %vm164 = vcmp.eq.s32.totalorder %v37, %v163
    %vm165 = vcmp.eq.s32.totalorder %v38, %v163
    %vm166 = vcmp.eq.s32.totalorder %v39, %v163
    %vm167 = vcmp.eq.s32.totalorder %v40, %v163
    %v168 = vsel %vm164, 1, 0
    %v169 = vsel %vm165, 1, 0
    %v170 = vsel %vm166, 1, 0
    %v171 = vsel %vm167, 1, 0
    %v172 = vcvt.s32.f32 %v168
    %v173 = vcvt.s32.f32 %v169
    %v174 = vcvt.s32.f32 %v170
    %v175 = vcvt.s32.f32 %v171
    %v176 = vadd.f32 %v156, %v172
    %v177 = vadd.f32 %v157, %v173
    %v178 = vadd.f32 %v158, %v174
    %v179 = vadd.f32 %v159, %v175
    %v180 = vadd.s32 %v35, 448
    %181 = vset.pattern.permute.xlu0 7
    %182 = vperm.xlu0 %181, %v180
    %v183 = vpop.permute.xlu0 %182
    %vm184 = vcmp.eq.s32.totalorder %v37, %v183
    %vm185 = vcmp.eq.s32.totalorder %v38, %v183
    %vm186 = vcmp.eq.s32.totalorder %v39, %v183
    %vm187 = vcmp.eq.s32.totalorder %v40, %v183
    %v188 = vsel %vm184, 1, 0
    %v189 = vsel %vm185, 1, 0
    %v190 = vsel %vm186, 1, 0
    %v191 = vsel %vm187, 1, 0
    %v192 = vcvt.s32.f32 %v188
    %v193 = vcvt.s32.f32 %v189
    %v194 = vcvt.s32.f32 %v190
    %v195 = vcvt.s32.f32 %v191
    %v196 = vadd.f32 %v176, %v192
    %v197 = vadd.f32 %v177, %v193
    %v198 = vadd.f32 %v178, %v194
    %v199 = vadd.f32 %v179, %v195
    %v200 = vld [vmem:[#allocation2] sm:$0xff]
    %v201 = vld [vmem:[#allocation2 + $0x8] sm:$0xff]
    %v202 = vld [vmem:[#allocation2 + $0x10] sm:$0xff]
    %v203 = vld [vmem:[#allocation2 + $0x18] sm:$0xff]
    %v204 = vld [vmem:[#allocation2 + $0x20] sm:$0xff]
    %v205 = vld [vmem:[#allocation2 + $0x28] sm:$0xff]
    %v206 = vld [vmem:[#allocation2 + $0x30] sm:$0xff]
    %v207 = vld [vmem:[#allocation2 + $0x38] sm:$0xff]
    %v208 = vld [vmem:[#allocation2 + $0x40] sm:$0xff]
    %v209 = vld [vmem:[#allocation2 + $0x48] sm:$0xff]
    %v210 = vld [vmem:[#allocation2 + $0x50] sm:$0xff]
    %v211 = vld [vmem:[#allocation2 + $0x58] sm:$0xff]
    %v212 = vld [vmem:[#allocation2 + $0x60] sm:$0xff]
    %v213 = vld [vmem:[#allocation2 + $0x68] sm:$0xff]
    %v214 = vld [vmem:[#allocation2 + $0x70] sm:$0xff]
    %v215 = vld [vmem:[#allocation2 + $0x78] sm:$0xff]
    %v216 = vld [vmem:[#allocation2 + $0x80] sm:$0xff]
    %v217 = vld [vmem:[#allocation2 + $0x88] sm:$0xff]
    %v218 = vld [vmem:[#allocation2 + $0x90] sm:$0xff]
    %v219 = vld [vmem:[#allocation2 + $0x98] sm:$0xff]
    %v220 = vld [vmem:[#allocation2 + $0xa0] sm:$0xff]
    %v221 = vld [vmem:[#allocation2 + $0xa8] sm:$0xff]
    %v222 = vld [vmem:[#allocation2 + $0xb0] sm:$0xff]
    %v223 = vld [vmem:[#allocation2 + $0xb8] sm:$0xff]
    %v224 = vld [vmem:[#allocation2 + $0xc0] sm:$0xff]
    %v225 = vld [vmem:[#allocation2 + $0xc8] sm:$0xff]
    %v226 = vld [vmem:[#allocation2 + $0xd0] sm:$0xff]
    %v227 = vld [vmem:[#allocation2 + $0xd8] sm:$0xff]
    %v228 = vld [vmem:[#allocation2 + $0xe0] sm:$0xff]
    %v229 = vld [vmem:[#allocation2 + $0xe8] sm:$0xff]
    %v230 = vld [vmem:[#allocation2 + $0xf0] sm:$0xff]
    %v231 = vld [vmem:[#allocation2 + $0xf8] sm:$0xff]
    %v232 = vld [vmem:[#allocation2 + $0x100] sm:$0xff]
    %v233 = vld [vmem:[#allocation2 + $0x108] sm:$0xff]
    %v234 = vld [vmem:[#allocation2 + $0x110] sm:$0xff]
    %v235 = vld [vmem:[#allocation2 + $0x118] sm:$0xff]
    %v236 = vld [vmem:[#allocation2 + $0x120] sm:$0xff]
    %v237 = vld [vmem:[#allocation2 + $0x128] sm:$0xff]
    %v238 = vld [vmem:[#allocation2 + $0x130] sm:$0xff]
    %v239 = vld [vmem:[#allocation2 + $0x138] sm:$0xff]
    %v240 = vld [vmem:[#allocation2 + $0x140] sm:$0xff]
    %v241 = vld [vmem:[#allocation2 + $0x148] sm:$0xff]
    %v242 = vld [vmem:[#allocation2 + $0x150] sm:$0xff]
    %v243 = vld [vmem:[#allocation2 + $0x158] sm:$0xff]
    %v244 = vld [vmem:[#allocation2 + $0x160] sm:$0xff]
    %v245 = vld [vmem:[#allocation2 + $0x168] sm:$0xff]
    %v246 = vld [vmem:[#allocation2 + $0x170] sm:$0xff]
    %v247 = vld [vmem:[#allocation2 + $0x178] sm:$0xff]
    %v248 = vld [vmem:[#allocation2 + $0x180] sm:$0xff]
    %v249 = vld [vmem:[#allocation2 + $0x188] sm:$0xff]
    %v250 = vld [vmem:[#allocation2 + $0x190] sm:$0xff]
    %v251 = vld [vmem:[#allocation2 + $0x198] sm:$0xff]
    %v252 = vld [vmem:[#allocation2 + $0x1a0] sm:$0xff]
    %v253 = vld [vmem:[#allocation2 + $0x1a8] sm:$0xff]
    %v254 = vld [vmem:[#allocation2 + $0x1b0] sm:$0xff]
    %v255 = vld [vmem:[#allocation2 + $0x1b8] sm:$0xff]
    %v256 = vld [vmem:[#allocation2 + $0x1c0] sm:$0xff]
    %v257 = vld [vmem:[#allocation2 + $0x1c8] sm:$0xff]
    %v258 = vld [vmem:[#allocation2 + $0x1d0] sm:$0xff]
    %v259 = vld [vmem:[#allocation2 + $0x1d8] sm:$0xff]
    %v260 = vld [vmem:[#allocation2 + $0x1e0] sm:$0xff]
    %v261 = vld [vmem:[#allocation2 + $0x1e8] sm:$0xff]
    %v262 = vld [vmem:[#allocation2 + $0x1f0] sm:$0xff]
    %v263 = vld [vmem:[#allocation2 + $0x1f8] sm:$0xff]
    %v264 = vld [vmem:[%s2] sm:$0x1]
    %v266 = vlaneseq
    %v267 = vshrl.u32 %v266, 7
    %v268 = vsub.s32 0, %v267
    %v269 = vrot.slane %v264, %v268
    %271 = vmatprep.subr.mxu0 0.0
    %272 = vmatpush1.msra.mxu0 %v215
    %273 = vmatprep.subr.mxu0 0.0
    %274 = vmatpush1.msra.mxu0 %v214
    %275 = vmatprep.subr.mxu0 0.0
    %276 = vmatpush1.msra.mxu0 %v213
    %277 = vmatprep.subr.mxu0 0.0
    %278 = vmatpush1.msra.mxu0 %v212
    %279 = vmatprep.subr.mxu0 0.0
    %280 = vmatpush1.msra.mxu0 %v211
    %281 = vmatprep.subr.mxu0 0.0
    %282 = vmatpush1.msra.mxu0 %v210
    %283 = vmatprep.subr.mxu0 0.0
    %284 = vmatpush1.msra.mxu0 %v209
    %285 = vmatprep.subr.mxu0 0.0
    %286 = vmatpush1.msra.mxu0 %v208
    %287 = vmatprep.subr.mxu0 0.0
    %288 = vmatpush1.msra.mxu0 %v207
    %289 = vmatprep.subr.mxu0 0.0
    %290 = vmatpush1.msra.mxu0 %v206
    %291 = vmatprep.subr.mxu0 0.0
    %292 = vmatpush1.msra.mxu0 %v205
    %293 = vmatprep.subr.mxu0 0.0
    %294 = vmatpush1.msra.mxu0 %v204
    %295 = vmatprep.subr.mxu0 0.0
    %296 = vmatpush1.msra.mxu0 %v203
    %297 = vmatprep.subr.mxu0 0.0
    %298 = vmatpush1.msra.mxu0 %v202
    %299 = vmatprep.subr.mxu0 0.0
    %300 = vmatpush1.msra.mxu0 %v201
    %301 = vmatprep.subr.mxu0 0.0
    %302 = vmatpush1.msra.mxu0 %v200
    %303 = vmatprep.subr.mxu0 0.0
    %304 = vmatpush2.msra.mxu0 %v231
    %305 = vmatprep.subr.mxu0 0.0
    %306 = vmatpush2.msra.mxu0 %v230
    %307 = vmatprep.subr.mxu0 0.0
    %308 = vmatpush2.msra.mxu0 %v229
    %309 = vmatprep.subr.mxu0 0.0
    %310 = vmatpush2.msra.mxu0 %v228
    %311 = vmatprep.subr.mxu0 0.0
    %312 = vmatpush2.msra.mxu0 %v227
    %313 = vmatprep.subr.mxu0 0.0
    %314 = vmatpush2.msra.mxu0 %v226
    %315 = vmatprep.subr.mxu0 0.0
    %316 = vmatpush2.msra.mxu0 %v225
    %317 = vmatprep.subr.mxu0 0.0
    %318 = vmatpush2.msra.mxu0 %v224
    %319 = vmatprep.subr.mxu0 0.0
    %320 = vmatpush2.msra.mxu0 %v223
    %321 = vmatprep.subr.mxu0 0.0
    %322 = vmatpush2.msra.mxu0 %v222
    %323 = vmatprep.subr.mxu0 0.0
    %324 = vmatpush2.msra.mxu0 %v221
    %325 = vmatprep.subr.mxu0 0.0
    %326 = vmatpush2.msra.mxu0 %v220
    %327 = vmatprep.subr.mxu0 0.0
    %328 = vmatpush2.msra.mxu0 %v219
    %329 = vmatprep.subr.mxu0 0.0
    %330 = vmatpush2.msra.mxu0 %v218
    %331 = vmatprep.subr.mxu0 0.0
    %332 = vmatpush2.msra.mxu0 %v217
    %333 = vmatprep.subr.mxu0 0.0
    %334 = vmatpush2.msra.mxu0 %v216
    %335 = vmatprep.mubr.f32.mxu0 %v197
    %336 = vmatmul.mubr.f32.gmra.mxu0 %v196
    %v337 = vpop.f32.mrf.mxu0
    %v338 = vadd.f32 %v269, %v337
    %v339 = vpop.f32.mrf.mxu0
    %340 = vdwg.mxu0
    %341 = vmatprep.subr.mxu0 0.0
    %342 = vmatpush1.msra.mxu0 %v247
    %343 = vmatprep.subr.mxu0 0.0
    %344 = vmatpush1.msra.mxu0 %v246
    %345 = vmatprep.subr.mxu0 0.0
    %346 = vmatpush1.msra.mxu0 %v245
    %347 = vmatprep.subr.mxu0 0.0
    %348 = vmatpush1.msra.mxu0 %v244
    %349 = vmatprep.subr.mxu0 0.0
    %350 = vmatpush1.msra.mxu0 %v243
    %351 = vmatprep.subr.mxu0 0.0
    %352 = vmatpush1.msra.mxu0 %v242
    %353 = vmatprep.subr.mxu0 0.0
    %354 = vmatpush1.msra.mxu0 %v241
    %355 = vmatprep.subr.mxu0 0.0
    %356 = vmatpush1.msra.mxu0 %v240
    %357 = vmatprep.subr.mxu0 0.0
    %358 = vmatpush1.msra.mxu0 %v239
    %359 = vmatprep.subr.mxu0 0.0
    %360 = vmatpush1.msra.mxu0 %v238
    %361 = vmatprep.subr.mxu0 0.0
    %362 = vmatpush1.msra.mxu0 %v237
    %363 = vmatprep.subr.mxu0 0.0
    %364 = vmatpush1.msra.mxu0 %v236
    %365 = vmatprep.subr.mxu0 0.0
    %366 = vmatpush1.msra.mxu0 %v235
    %367 = vmatprep.subr.mxu0 0.0
    %368 = vmatpush1.msra.mxu0 %v234
    %369 = vmatprep.subr.mxu0 0.0
    %370 = vmatpush1.msra.mxu0 %v233
    %371 = vmatprep.subr.mxu0 0.0
    %372 = vmatpush1.msra.mxu0 %v232
    %373 = vmatprep.subr.mxu0 0.0
    %374 = vmatpush2.msra.mxu0 %v263
    %375 = vmatprep.subr.mxu0 0.0
    %376 = vmatpush2.msra.mxu0 %v262
    %377 = vmatprep.subr.mxu0 0.0
    %378 = vmatpush2.msra.mxu0 %v261
    %379 = vmatprep.subr.mxu0 0.0
    %380 = vmatpush2.msra.mxu0 %v260
    %381 = vmatprep.subr.mxu0 0.0
    %382 = vmatpush2.msra.mxu0 %v259
    %383 = vmatprep.subr.mxu0 0.0
    %384 = vmatpush2.msra.mxu0 %v258
    %385 = vmatprep.subr.mxu0 0.0
    %386 = vmatpush2.msra.mxu0 %v257
    %387 = vmatprep.subr.mxu0 0.0
    %388 = vmatpush2.msra.mxu0 %v256
    %389 = vmatprep.subr.mxu0 0.0
    %390 = vmatpush2.msra.mxu0 %v255
    %391 = vmatprep.subr.mxu0 0.0
    %392 = vmatpush2.msra.mxu0 %v254
    %393 = vmatprep.subr.mxu0 0.0
    %394 = vmatpush2.msra.mxu0 %v253
    %395 = vmatprep.subr.mxu0 0.0
    %396 = vmatpush2.msra.mxu0 %v252
    %397 = vmatprep.subr.mxu0 0.0
    %398 = vmatpush2.msra.mxu0 %v251
    %399 = vmatprep.subr.mxu0 0.0
    %400 = vmatpush2.msra.mxu0 %v250
    %401 = vmatprep.subr.mxu0 0.0
    %402 = vmatpush2.msra.mxu0 %v249
    %403 = vmatprep.subr.mxu0 0.0
    %404 = vmatpush2.msra.mxu0 %v248
    %405 = vmatprep.mubr.f32.mxu0 %v199
    %406 = vmatmul.mubr.f32.gmra.mxu0 %v198
    %v407 = vpop.f32.mrf.mxu0
    %v408 = vadd.f32 %v338, %v407
    %v409 = vpop.f32.mrf.mxu0
    %410 = vdwg.mxu0
    %v411 = vmax.f32 %v408, 0.0
    %v412 = vld [vmem:[%s3] sm:$0xff]
    %v413 = vld [vmem:[%s3 + $0x8] sm:$0xff]
    %v414 = vld [vmem:[%s3 + $0x10] sm:$0xff]
    %v415 = vld [vmem:[%s3 + $0x18] sm:$0xff]
    %v416 = vld [vmem:[%s3 + $0x20] sm:$0xff]
    %v417 = vld [vmem:[%s3 + $0x28] sm:$0xff]
    %v418 = vld [vmem:[%s3 + $0x30] sm:$0xff]
    %v419 = vld [vmem:[%s3 + $0x38] sm:$0xff]
    %v420 = vld [vmem:[%s3 + $0x40] sm:$0xff]
    %v421 = vld [vmem:[%s3 + $0x48] sm:$0xff]
    %v422 = vld [vmem:[%s3 + $0x50] sm:$0xff]
    %v423 = vld [vmem:[%s3 + $0x58] sm:$0xff]
    %v424 = vld [vmem:[%s3 + $0x60] sm:$0xff]
    %v425 = vld [vmem:[%s3 + $0x68] sm:$0xff]
    %v426 = vld [vmem:[%s3 + $0x70] sm:$0xff]
    %v427 = vld [vmem:[%s3 + $0x78] sm:$0xff]
    %v428 = vld [vmem:[%s4] sm:$0x1]
    %v430 = vlaneseq
    %v431 = vshrl.u32 %v430, 7
    %v432 = vsub.s32 0, %v431
    %v433 = vrot.slane %v428, %v432
    %435 = vmatprep.subr.mxu0 0.0
    %436 = vmatpush1.msra.mxu0 %v427
    %437 = vmatprep.subr.mxu0 0.0
    %438 = vmatpush1.msra.mxu0 %v426
    %439 = vmatprep.subr.mxu0 0.0
    %440 = vmatpush1.msra.mxu0 %v425
    %441 = vmatprep.subr.mxu0 0.0
    %442 = vmatpush1.msra.mxu0 %v424
    %443 = vmatprep.subr.mxu0 0.0
    %444 = vmatpush1.msra.mxu0 %v423
    %445 = vmatprep.subr.mxu0 0.0
    %446 = vmatpush1.msra.mxu0 %v422
    %447 = vmatprep.subr.mxu0 0.0
    %448 = vmatpush1.msra.mxu0 %v421
    %449 = vmatprep.subr.mxu0 0.0
    %450 = vmatpush1.msra.mxu0 %v420
    %451 = vmatprep.subr.mxu0 0.0
    %452 = vmatpush1.msra.mxu0 %v419
    %453 = vmatprep.subr.mxu0 0.0
    %454 = vmatpush1.msra.mxu0 %v418
    %455 = vmatprep.subr.mxu0 0.0
    %456 = vmatpush1.msra.mxu0 %v417
    %457 = vmatprep.subr.mxu0 0.0
    %458 = vmatpush1.msra.mxu0 %v416
    %459 = vmatprep.subr.mxu0 0.0
    %460 = vmatpush1.msra.mxu0 %v415
    %461 = vmatprep.subr.mxu0 0.0
    %462 = vmatpush1.msra.mxu0 %v414
    %463 = vmatprep.subr.mxu0 0.0
    %464 = vmatpush1.msra.mxu0 %v413
    %465 = vmatprep.subr.mxu0 0.0
    %466 = vmatpush1.msra.mxu0 %v412
    %467 = vmatprep.subr.mxu0 0.0
    %468 = vmatpush2.msra.mxu0 0.0
    %469 = vmatprep.subr.mxu0 0.0
    %470 = vmatpush2.msra.mxu0 0.0
    %471 = vmatprep.subr.mxu0 0.0
    %472 = vmatpush2.msra.mxu0 0.0
    %473 = vmatprep.subr.mxu0 0.0
    %474 = vmatpush2.msra.mxu0 0.0
    %475 = vmatprep.subr.mxu0 0.0
    %476 = vmatpush2.msra.mxu0 0.0
    %477 = vmatprep.subr.mxu0 0.0
    %478 = vmatpush2.msra.mxu0 0.0
    %479 = vmatprep.subr.mxu0 0.0
    %480 = vmatpush2.msra.mxu0 0.0
    %481 = vmatprep.subr.mxu0 0.0
    %482 = vmatpush2.msra.mxu0 0.0
    %483 = vmatprep.subr.mxu0 0.0
    %484 = vmatpush2.msra.mxu0 0.0
    %485 = vmatprep.subr.mxu0 0.0
    %486 = vmatpush2.msra.mxu0 0.0
    %487 = vmatprep.subr.mxu0 0.0
    %488 = vmatpush2.msra.mxu0 0.0
    %489 = vmatprep.subr.mxu0 0.0
    %490 = vmatpush2.msra.mxu0 0.0
    %491 = vmatprep.subr.mxu0 0.0
    %492 = vmatpush2.msra.mxu0 0.0
    %493 = vmatprep.subr.mxu0 0.0
    %494 = vmatpush2.msra.mxu0 0.0
    %495 = vmatprep.subr.mxu0 0.0
    %496 = vmatpush2.msra.mxu0 0.0
    %497 = vmatprep.subr.mxu0 0.0
    %498 = vmatpush2.msra.mxu0 0.0
    %499 = vmatprep.mubr.f32.mxu0 0.0
    %500 = vmatmul.mubr.f32.gmra.mxu0 %v411
    %v501 = vpop.f32.mrf.mxu0
    %v502 = vadd.f32 %v433, %v501
    %v503 = vpop.f32.mrf.mxu0
    %504 = vdwg.mxu0
    %vm505 = vcmask 64512
    %506 = vst.msk [vmem:[#allocation5] sm:$0xff] %vm505, %v502
    // Predicated region
    $region26: #{tpu_custom_call.1} parent=1 // pred_check
      _
    $region27: #{tpu_custom_call.1} parent=1 // pred_check_branch
      %508 = sbr.rel (0) target = $region29
    $region28: #{tpu_custom_call.1} parent=1 // pred_region
      %s510 = ssub.s32 128, 128
      %511 = vsyncadd [#allocation4], %s510
      %s513 = sshll.u32 [#allocation5], 4
      %s514 = int_to_ptr.vmem [resolvable:$true] %s513
      %516 = dma.vmem_to_hbm [thread:$0]  %s514, 128, %s5, [#allocation4]
    $region29: #{tpu_custom_call.1} parent=1 // pred_fallthru
      _
    // Predicated region
    $region30: #{tpu_custom_call.1} parent=1 // pred_check
      _
    $region31: #{tpu_custom_call.1} parent=1 // pred_check_branch
      %518 = sbr.rel (0) target = $region33
    $region32: #{tpu_custom_call.1} parent=1 // pred_region
      %519 = dma.done [#allocation4], 128
    $region33: #{tpu_custom_call.1} parent=1 // pred_fallthru
      _
    %520 = vsyncpa [#allocation3], 1
    %521 = vsyncpa [#allocation4], 1

</llo_original>
